<compile_context>
chip_gen: v7x
topology: tpu7x:2x2x1
jax: 0.10.0
libtpu: 0.0.40
codegen_flags: <defaults>
</compile_context>

<pallas_src>
import functools

import jax
import jax.numpy as jnp
from jax.experimental import pallas as pl
from jax.experimental.pallas import tpu as pltpu


# ---------------------------------------------------------------------------
# Kernel bodies
# ---------------------------------------------------------------------------

def _ca_fused_kernel(x_ref, w1_ref, b1_ref, w2_ref, b2_ref, o_ref,
                     *, channels_last, inv_len):
    """One batch slab per grid step: pool + MLP + sigmoid + scale, x read once."""
    x = x_ref[...]                               # (1, L, C) or (1, C, L)
    red_axis = 1 if channels_last else 2
    # Pool: accumulate in f32 without materializing an f32 copy of the slab.
    y = jnp.sum(x, axis=red_axis, dtype=jnp.float32) * inv_len        # (1, C)
    # Two 1x1 convs == two tiny matmuls (weights pre-transposed in wrapper).
    h = jnp.dot(y, w1_ref[...], preferred_element_type=jnp.float32) + b1_ref[...]
    h = jnp.maximum(h, 0.0)                                           # (1, Cr)
    s = jnp.dot(h, w2_ref[...], preferred_element_type=jnp.float32) + b2_ref[...]
    s = jax.nn.sigmoid(s).astype(x.dtype)                             # (1, C)
    if channels_last:
        o_ref[...] = x * s[:, None, :]
    else:
        o_ref[...] = x * s[:, :, None]


def _ca_pool_kernel(x_ref, w1_ref, b1_ref, w2_ref, b2_ref, s_ref,
                    *, channels_last, inv_len, length, tile):
    """Tiled pass 1: accumulate per-channel sum over L tiles, finalize scale."""
    li = pl.program_id(1)

    @pl.when(li == 0)
    def _init():
        s_ref[...] = jnp.zeros_like(s_ref)

    x = x_ref[...]                               # (1, Lt, C) or (1, C, Lt)
    red_axis = 1 if channels_last else 2
    # Mask the ragged tail of the last tile (OOB block contents are undefined).
    pos = jax.lax.broadcasted_iota(jnp.int32, x.shape, red_axis) + li * tile
    x = jnp.where(pos < length, x, jnp.zeros_like(x))
    s_ref[...] += jnp.sum(x, axis=red_axis, keepdims=True, dtype=jnp.float32)

    @pl.when(li == pl.num_programs(1) - 1)
    def _finalize():
        if channels_last:
            y = s_ref[...][:, 0, :] * inv_len    # (1, C)
        else:
            y = s_ref[...][:, :, 0] * inv_len    # (1, C)
        h = jnp.dot(y, w1_ref[...], preferred_element_type=jnp.float32) + b1_ref[...]
        h = jnp.maximum(h, 0.0)
        s = jax.nn.sigmoid(
            jnp.dot(h, w2_ref[...], preferred_element_type=jnp.float32) + b2_ref[...])
        if channels_last:
            s_ref[...] = s[:, None, :]
        else:
            s_ref[...] = s[:, :, None]


def _ca_apply_kernel(x_ref, s_ref, o_ref):
    """Tiled pass 2: o = x * s (scale broadcast along the pooled axis)."""
    o_ref[...] = x_ref[...] * s_ref[...].astype(x_ref.dtype)


# ---------------------------------------------------------------------------
# Wrapper (weight-norm resolution, layout / tiling decisions, pallas_call)
# ---------------------------------------------------------------------------

def _weight_norm(v, g):
    # PyTorch weight_norm on Conv1d: norm over dims (1, 2) per output channel.
    norm = jnp.sqrt(jnp.sum(v * v, axis=(1, 2), keepdims=True))
    return g * v / norm


def _prep_weights(params):
    w1 = _weight_norm(params["v1"], params["g1"])[:, :, 0]     # (Cr, C)
    w2 = _weight_norm(params["v2"], params["g2"])[:, :, 0]     # (C, Cr)
    # Pre-transpose ONCE here so the kernel never transposes on the XLU.
    w1t = w1.T.astype(jnp.float32)                             # (C, Cr)
    w2t = w2.T.astype(jnp.float32)                             # (Cr, C)
    b1 = params["b1"].astype(jnp.float32)[None, :]             # (1, Cr)
    b2 = params["b2"].astype(jnp.float32)[None, :]             # (1, C)
    return w1t, b1, w2t, b2


def ca_layer(x, params, *, data_format="NCW",
             max_slab_bytes=2 * 1024 * 1024,        # per-step x tile budget
             vmem_limit_bytes=32 * 1024 * 1024):    # raise v5e's 16 MiB default
    """CALayer forward.  x: (B, C, L) if data_format == 'NCW', (B, L, C) if 'NWC'."""
    assert data_format in ("NCW", "NWC")
    channels_last = data_format == "NWC"
    B = x.shape[0]
    if channels_last:
        L, C = x.shape[1], x.shape[2]
    else:
        C, L = x.shape[1], x.shape[2]

    w1t, b1, w2t, b2 = _prep_weights(params)
    Cr = w1t.shape[1]
    itemsize = jnp.dtype(x.dtype).itemsize
    slab_bytes = C * L * itemsize

    # Weights / biases: constant index_map => stay resident in VMEM.
    weight_specs = [
        pl.BlockSpec((C, Cr), lambda *_: (0, 0)),
        pl.BlockSpec((1, Cr), lambda *_: (0, 0)),
        pl.BlockSpec((Cr, C), lambda *_: (0, 0)),
        pl.BlockSpec((1, C), lambda *_: (0, 0)),
    ]
    cost = pl.CostEstimate(
        flops=2 * B * C * L + 4 * B * C * Cr,
        transcendentals=B * C,
        bytes_accessed=2 * B * C * L * itemsize,
    )

    # ---------------- fused path: one (C,L) slab per batch, x read once ----
    if slab_bytes <= max_slab_bytes:
        x_block = (1, L, C) if channels_last else (1, C, L)
        kernel = functools.partial(
            _ca_fused_kernel, channels_last=channels_last, inv_len=1.0 / L)
        return pl.pallas_call(
            kernel,
            grid=(B,),
            in_specs=[pl.BlockSpec(x_block, lambda b: (b, 0, 0))] + weight_specs,
            out_specs=pl.BlockSpec(x_block, lambda b: (b, 0, 0)),
            out_shape=jax.ShapeDtypeStruct(x.shape, x.dtype),
            compiler_params=pltpu.CompilerParams(
                dimension_semantics=("parallel",),
                vmem_limit_bytes=vmem_limit_bytes),
            cost_estimate=cost,
        )(x, w1t, b1, w2t, b2)

    # ---------------- tiled path: slab too big -> 2-pass (pool, then scale) --
    gran = 8 if channels_last else 128             # sublane vs lane granularity
    lt = (max_slab_bytes // (C * itemsize)) // gran * gran
    lt = int(max(gran, lt))
    n_l = pl.cdiv(L, lt)

    if channels_last:
        x_block = (1, lt, C)
        x_map = lambda b, l: (b, l, 0)
        s_shape, s_block = (B, 1, C), (1, 1, C)
    else:
        x_block = (1, C, lt)
        x_map = lambda b, l: (b, 0, l)
        s_shape, s_block = (B, C, 1), (1, C, 1)
    s_map = lambda b, l: (b, 0, 0)

    # Pass 1: per-channel pooled scale s (accumulator resident across L axis).
    pool_kernel = functools.partial(
        _ca_pool_kernel, channels_last=channels_last,
        inv_len=1.0 / L, length=L, tile=lt)
    s = pl.pallas_call(
        pool_kernel,
        grid=(B, n_l),
        in_specs=[pl.BlockSpec(x_block, x_map)] + weight_specs,
        out_specs=pl.BlockSpec(s_block, s_map),
        out_shape=jax.ShapeDtypeStruct(s_shape, jnp.float32),
        compiler_params=pltpu.CompilerParams(
            dimension_semantics=("parallel", "arbitrary"),
            vmem_limit_bytes=vmem_limit_bytes),
        cost_estimate=pl.CostEstimate(
            flops=2 * B * C * L + 4 * B * C * Cr,
            transcendentals=B * C,
            bytes_accessed=B * C * L * itemsize),
    )(x, w1t, b1, w2t, b2)

    # Pass 2: o = x * s, tile by tile.
    return pl.pallas_call(
        _ca_apply_kernel,
        grid=(B, n_l),
        in_specs=[pl.BlockSpec(x_block, x_map), pl.BlockSpec(s_block, s_map)],
        out_specs=pl.BlockSpec(x_block, x_map),
        out_shape=jax.ShapeDtypeStruct(x.shape, x.dtype),
        compiler_params=pltpu.CompilerParams(
            dimension_semantics=("parallel", "parallel"),
            vmem_limit_bytes=vmem_limit_bytes),
        cost_estimate=cost,
    )(x, s)


# ---------------------------------------------------------------------------
# Params + pure-JAX reference
# ---------------------------------------------------------------------------

def init_params(key, channel, reduction=10):
    cr = max(1, channel // reduction)
    k1, k2, k3, k4 = jax.random.split(key, 4)
    v1 = jax.random.normal(k1, (cr, channel, 1), jnp.float32) * 0.2
    v2 = jax.random.normal(k2, (channel, cr, 1), jnp.float32) * 0.2
    # weight_norm init: g = ||v||; perturb so g * v/||v|| is actually exercised.
    g1 = jnp.sqrt(jnp.sum(v1 * v1, axis=(1, 2), keepdims=True)) * 1.1
    g2 = jnp.sqrt(jnp.sum(v2 * v2, axis=(1, 2), keepdims=True)) * 0.9
    b1 = jax.random.normal(k3, (cr,), jnp.float32) * 0.1
    b2 = jax.random.normal(k4, (channel,), jnp.float32) * 0.1
    return {"v1": v1, "g1": g1, "b1": b1, "v2": v2, "g2": g2, "b2": b2}


def ca_layer_ref(x, params):
    """Pure-JAX reference (x in NCW)."""
    w1 = _weight_norm(params["v1"], params["g1"])[:, :, 0]
    w2 = _weight_norm(params["v2"], params["g2"])[:, :, 0]
    y = jnp.mean(x, axis=-1)
    h = jnp.maximum(y @ w1.T + params["b1"], 0.0)
    s = jax.nn.sigmoid(h @ w2.T + params["b2"])
    return x * s[:, :, None]


# ---------------------------------------------------------------------------
# Self-test
# ---------------------------------------------------------------------------

if __name__ == "__main__":
    key = jax.random.PRNGKey(0)
    kx, kp, kx2 = jax.random.split(key, 3)

    # Shapes consistent with Net: the CALayer there sees 128 channels.
    B, C, L = 2, 128, 96
    x = jax.random.normal(kx, (B, C, L), jnp.float32)
    params = init_params(kp, C, reduction=10)
    ref = ca_layer_ref(x, params)

    # 1) NCW (PyTorch layout), fused single-read path.
    out = jax.block_until_ready(ca_layer(x, params))
    assert out.shape == (B, C, L)
    assert jnp.allclose(out, ref, atol=2e-5, rtol=2e-5), "NCW fused mismatch"

    # 2) NWC (lane-dense: C=128 on the lane axis), fused path.
    x_nwc = jnp.transpose(x, (0, 2, 1))
    out_nwc = jax.block_until_ready(ca_layer(x_nwc, params, data_format="NWC"))
    assert jnp.allclose(jnp.transpose(out_nwc, (0, 2, 1)), ref,
                        atol=2e-5, rtol=2e-5), "NWC fused mismatch"

    # 3) Long, non-multiple length + tiny forced slab budget -> two-pass tiled
    #    path (pool-accumulate with pl.when init/finalize, then scale).
    L2 = 1000
    x2 = jax.random.normal(kx2, (B, C, L2), jnp.float32)
    ref2 = ca_layer_ref(x2, params)
    out2 = jax.block_until_ready(ca_layer(x2, params, max_slab_bytes=64 * 1024))
    assert jnp.allclose(out2, ref2, atol=2e-5, rtol=2e-5), "NCW tiled mismatch"

    # 4) Tiled + channels-last (sublane-tiled pooling, lane-dense stores).
    x2_nwc = jnp.transpose(x2, (0, 2, 1))
    out2_nwc = jax.block_until_ready(
        ca_layer(x2_nwc, params, data_format="NWC", max_slab_bytes=64 * 1024))
    assert jnp.allclose(jnp.transpose(out2_nwc, (0, 2, 1)), ref2,
                        atol=2e-5, rtol=2e-5), "NWC tiled mismatch"

    print("KERNEL_OK")
</pallas_src>

<mosaic_0001>
module attributes {stable_mosaic.version = 11 : i64} {
  func.func @_ca_fused_kernel(%arg0: i32, %arg1: memref<1x128x96xf32, #tpu.memory_space<vmem>>, %arg2: memref<128x12xf32, #tpu.memory_space<vmem>>, %arg3: memref<1x12xf32, #tpu.memory_space<vmem>>, %arg4: memref<12x128xf32, #tpu.memory_space<vmem>>, %arg5: memref<1x128xf32, #tpu.memory_space<vmem>>, %arg6: memref<1x128x96xf32, #tpu.memory_space<vmem>>) attributes {dimension_semantics = [#tpu.dimension_semantics<parallel>], iteration_bounds = array<i64: 2>, scalar_prefetch = 0 : i64, scratch_operands = 0 : i64, tpu.core_type = #tpu.core_type<tc>, window_params = [{transform_indices = @transform_0, window_bounds = array<i64: 1, 128, 96>}, {pipeline_mode = #tpu.pipeline_mode<synchronous>, transform_indices = @transform_1, window_bounds = array<i64: 128, 12>}, {pipeline_mode = #tpu.pipeline_mode<synchronous>, transform_indices = @transform_2, window_bounds = array<i64: 1, 12>}, {pipeline_mode = #tpu.pipeline_mode<synchronous>, transform_indices = @transform_3, window_bounds = array<i64: 12, 128>}, {pipeline_mode = #tpu.pipeline_mode<synchronous>, transform_indices = @transform_4, window_bounds = array<i64: 1, 128>}, {transform_indices = @transform_5, window_bounds = array<i64: 1, 128, 96>}]} {
    %c0 = arith.constant 0 : index
    %c0_0 = arith.constant 0 : index
    %c0_1 = arith.constant 0 : index
    %0 = vector.load %arg1[%c0, %c0_0, %c0_1] : memref<1x128x96xf32, #tpu.memory_space<vmem>>, vector<1x128x96xf32>
    %cst = arith.constant dense<0.000000e+00> : vector<1x128xf32>
    %1 = vector.multi_reduction <add>, %0, %cst [2] : vector<1x128x96xf32> to vector<1x128xf32>
    %cst_2 = arith.constant 0.010416667 : f32
    %2 = vector.broadcast %cst_2 : f32 to vector<1x128xf32>
    %3 = arith.mulf %1, %2 : vector<1x128xf32>
    %c0_3 = arith.constant 0 : index
    %c0_4 = arith.constant 0 : index
    %4 = vector.load %arg2[%c0_3, %c0_4] : memref<128x12xf32, #tpu.memory_space<vmem>>, vector<128x12xf32>
    %cst_5 = arith.constant dense<0.000000e+00> : vector<1x12xf32>
    %5 = tpu.matmul %3, %4, %cst_5 {dimension_numbers = #tpu.dot_dimension_numbers<[1], [0], [0], [1], [0, 0, 1, 1], [], []>} : vector<1x128xf32>, vector<128x12xf32>, vector<1x12xf32> -> vector<1x12xf32>
    %c0_6 = arith.constant 0 : index
    %c0_7 = arith.constant 0 : index
    %6 = vector.load %arg3[%c0_6, %c0_7] : memref<1x12xf32, #tpu.memory_space<vmem>>, vector<1x12xf32>
    %7 = arith.addf %5, %6 : vector<1x12xf32>
    %cst_8 = arith.constant 0.000000e+00 : f32
    %8 = vector.broadcast %cst_8 : f32 to vector<1x12xf32>
    %9 = arith.maximumf %7, %8 : vector<1x12xf32>
    %c0_9 = arith.constant 0 : index
    %c0_10 = arith.constant 0 : index
    %10 = vector.load %arg4[%c0_9, %c0_10] : memref<12x128xf32, #tpu.memory_space<vmem>>, vector<12x128xf32>
    %cst_11 = arith.constant dense<0.000000e+00> : vector<1x128xf32>
    %11 = tpu.matmul %9, %10, %cst_11 {dimension_numbers = #tpu.dot_dimension_numbers<[1], [0], [0], [1], [0, 0, 1, 1], [], []>} : vector<1x12xf32>, vector<12x128xf32>, vector<1x128xf32> -> vector<1x128xf32>
    %c0_12 = arith.constant 0 : index
    %c0_13 = arith.constant 0 : index
    %12 = vector.load %arg5[%c0_12, %c0_13] : memref<1x128xf32, #tpu.memory_space<vmem>>, vector<1x128xf32>
    %13 = arith.addf %11, %12 : vector<1x128xf32>
    %14 = arith.negf %13 : vector<1x128xf32>
    %15 = math.exp %14 : vector<1x128xf32>
    %cst_14 = arith.constant 1.000000e+00 : f32
    %16 = vector.broadcast %cst_14 : f32 to vector<1x128xf32>
    %17 = arith.addf %16, %15 : vector<1x128xf32>
    %18 = arith.divf %16, %17 : vector<1x128xf32>
    %19 = vector.shape_cast %18 : vector<1x128xf32> to vector<1x128x1xf32>
    %20 = vector.broadcast %19 : vector<1x128x1xf32> to vector<1x128x96xf32>
    %21 = arith.mulf %0, %20 : vector<1x128x96xf32>
    %c0_15 = arith.constant 0 : index
    %c0_16 = arith.constant 0 : index
    %c0_17 = arith.constant 0 : index
    %22 = vector.load %arg6[%c0_15, %c0_16, %c0_17] : memref<1x128x96xf32, #tpu.memory_space<vmem>>, vector<1x128x96xf32>
    tpu.vector_store %arg6[%c0_15, %c0_16, %c0_17], %21 {strides = array<i32>} : memref<1x128x96xf32, #tpu.memory_space<vmem>>, vector<1x128x96xf32>,
    return
  }
  func.func @transform_0(%arg0: i32) -> (i32, i32, i32) {
    %c0_i32 = arith.constant 0 : i32
    %c0_i32_0 = arith.constant 0 : i32
    %c0_i32_1 = arith.constant 0 : i32
    return %arg0, %c0_i32, %c0_i32_0 : i32, i32, i32
  }
  func.func @transform_1(%arg0: i32) -> (i32, i32) {
    %c0_i32 = arith.constant 0 : i32
    %c0_i32_0 = arith.constant 0 : i32
    %c0_i32_1 = arith.constant 0 : i32
    return %c0_i32, %c0_i32_0 : i32, i32
  }
  func.func @transform_2(%arg0: i32) -> (i32, i32) {
    %c0_i32 = arith.constant 0 : i32
    %c0_i32_0 = arith.constant 0 : i32
    %c0_i32_1 = arith.constant 0 : i32
    return %c0_i32, %c0_i32_0 : i32, i32
  }
  func.func @transform_3(%arg0: i32) -> (i32, i32) {
    %c0_i32 = arith.constant 0 : i32
    %c0_i32_0 = arith.constant 0 : i32
    %c0_i32_1 = arith.constant 0 : i32
    return %c0_i32, %c0_i32_0 : i32, i32
  }
  func.func @transform_4(%arg0: i32) -> (i32, i32) {
    %c0_i32 = arith.constant 0 : i32
    %c0_i32_0 = arith.constant 0 : i32
    %c0_i32_1 = arith.constant 0 : i32
    return %c0_i32, %c0_i32_0 : i32, i32
  }
  func.func @transform_5(%arg0: i32) -> (i32, i32, i32) {
    %c0_i32 = arith.constant 0 : i32
    %c0_i32_0 = arith.constant 0 : i32
    %c0_i32_1 = arith.constant 0 : i32
    return %arg0, %c0_i32, %c0_i32_0 : i32, i32, i32
  }
}

</mosaic_0001>

<llo_original>
// kernel: tpu_custom_call.1
$region0: #{tpu_custom_call.1}
  #allocation0 [shape = 'u32[]', space=smem, size = 0x4, offset = 0x4, fixed_abs, tag = 'smem constant byte address 0x4 - core index']
  #allocation1 [shape = 'u32[144,128]{1,0:T(1,128)}', space=vmem, size = 0x12000, scoped, tag = 'internal scratch']
  %s0 = inlined_call_operand.vmem [shape: f32[2,128,96], index: 0, kind: input, shape index: {}]
  %s1 = inlined_call_operand.vmem [shape: f32[128,12], index: 1, kind: input, shape index: {}]
  %s2 = inlined_call_operand.vmem [shape: f32[1,12], index: 2, kind: input, shape index: {}]
  %s3 = inlined_call_operand.vmem [shape: f32[12,128], index: 3, kind: input, shape index: {}]
  %s4 = inlined_call_operand.vmem [shape: f32[1,128], index: 4, kind: input, shape index: {}]
  %s5 = inlined_call_operand.vmem [shape: f32[2,128,96], index: 5, kind: output, shape index: {}]
  %s6 = sld [smem:[#allocation0]]
  $region53: #{tpu_custom_call.1} parent=0
    _
  %s8 = ssub.s32 1, %s6
  %s9 = scalar_select 0, %s8, %s6
  loop: start=0, step=1, limit=4
  $region2: #{tpu_custom_call.1} parent=0 // loop_pre_header
    _
  $region3: #{tpu_custom_call.1} parent=0 // loop_header
    %s11 = sphi 0, %s15
    %p12 = scmp.ge.s32.totalorder %s11, 4
    %s21 = sphi 0, %s23
    %s24 = sphi 0, %s21
    %s25 = sphi 0, %s24
    %s41 = sphi 0, %s25
    %s45 = sphi 0, %s45
    %s47 = sphi 0, %s45
    %s48 = sphi 0, %s47
    %s62 = sphi 0, %s48
    %s66 = sphi 0, %s66
    %s68 = sphi 0, %s66
    %s69 = sphi 0, %s68
    %s83 = sphi 0, %s69
    %s87 = sphi 0, %s87
    %s89 = sphi 0, %s87
    %s90 = sphi 0, %s89
    %s104 = sphi 0, %s90
    %s108 = sphi 0, %s108
    %s110 = sphi 0, %s108
    %s111 = sphi 0, %s110
    %s125 = sphi 0, %s111
    %s131 = sphi 0, %s133
    %s134 = sphi 0, %s131
    %s135 = sphi 0, %s134
    %s151 = sphi 0, %s135
  $region4: #{tpu_custom_call.1} parent=0 // loop_header_branch
    %14 = sbr.rel (%p12) target = $region8
  $region5: #{tpu_custom_call.1} parent=0 // loop_body
    %s16 = ssub.s32 %s11, 1
    %s17 = ssub.s32 %s11, 2
    %s18 = sadd.s32 %s11, 1
    %s19 = ssub.s32 %s11, %s18
    %p20 = scmp.eq.s32.totalorder %s19, 0
    %s22 = sadd.s32 %s21, 1
    %s23 = scalar_select %p20, %s21, %s22
    %p26 = pneg %p20
    %p27 = scmp.eq.s32.totalorder %s11, 1
    %p28 = por %p26, %p27
    %p29 = scmp.ne.s32.totalorder %s21, %s24
    %p30 = scmp.eq.s32.totalorder %s11, 0
    %p31 = por %p29, %p30
    %p32 = scmp.ne.s32.totalorder %s21, %s24
    %p33 = scmp.eq.s32.totalorder %s16, 1
    %p34 = por %p32, %p33
    %p35 = scmp.ne.s32.totalorder %s24, %s25
    %p36 = scmp.eq.s32.totalorder %s16, 0
    %p37 = por %p35, %p36
    %p38 = scmp.ne.s32.totalorder %s24, %s25
    %p39 = scmp.eq.s32.totalorder %s17, 1
    %p40 = por %p38, %p39
    %p42 = scmp.ne.s32.totalorder %s25, %s41
    %p43 = scmp.eq.s32.totalorder %s17, 0
    %p44 = por %p42, %p43
    %s46 = sadd.s32 %s45, 1
    %p49 = scmp.eq.s32.totalorder %s11, 1
    %p50 = scmp.ne.s32.totalorder %s45, %s47
    %p51 = scmp.eq.s32.totalorder %s11, 0
    %p52 = por %p50, %p51
    %p53 = scmp.ne.s32.totalorder %s45, %s47
    %p54 = scmp.eq.s32.totalorder %s16, 1
    %p55 = por %p53, %p54
    %p56 = scmp.ne.s32.totalorder %s47, %s48
    %p57 = scmp.eq.s32.totalorder %s16, 0
    %p58 = por %p56, %p57
    %p59 = scmp.ne.s32.totalorder %s47, %s48
    %p60 = scmp.eq.s32.totalorder %s17, 1
    %p61 = por %p59, %p60
    %p63 = scmp.ne.s32.totalorder %s48, %s62
    %p64 = scmp.eq.s32.totalorder %s17, 0
    %p65 = por %p63, %p64
    %s67 = sadd.s32 %s66, 1
    %p70 = scmp.eq.s32.totalorder %s11, 1
    %p71 = scmp.ne.s32.totalorder %s66, %s68
    %p72 = scmp.eq.s32.totalorder %s11, 0
    %p73 = por %p71, %p72
    %p74 = scmp.ne.s32.totalorder %s66, %s68
    %p75 = scmp.eq.s32.totalorder %s16, 1
    %p76 = por %p74, %p75
    %p77 = scmp.ne.s32.totalorder %s68, %s69
    %p78 = scmp.eq.s32.totalorder %s16, 0
    %p79 = por %p77, %p78
    %p80 = scmp.ne.s32.totalorder %s68, %s69
    %p81 = scmp.eq.s32.totalorder %s17, 1
    %p82 = por %p80, %p81
    %p84 = scmp.ne.s32.totalorder %s69, %s83
    %p85 = scmp.eq.s32.totalorder %s17, 0
    %p86 = por %p84, %p85
    %s88 = sadd.s32 %s87, 1
    %p91 = scmp.eq.s32.totalorder %s11, 1
    %p92 = scmp.ne.s32.totalorder %s87, %s89
    %p93 = scmp.eq.s32.totalorder %s11, 0
    %p94 = por %p92, %p93
    %p95 = scmp.ne.s32.totalorder %s87, %s89
    %p96 = scmp.eq.s32.totalorder %s16, 1
    %p97 = por %p95, %p96
    %p98 = scmp.ne.s32.totalorder %s89, %s90
    %p99 = scmp.eq.s32.totalorder %s16, 0
    %p100 = por %p98, %p99
    %p101 = scmp.ne.s32.totalorder %s89, %s90
    %p102 = scmp.eq.s32.totalorder %s17, 1
    %p103 = por %p101, %p102
    %p105 = scmp.ne.s32.totalorder %s90, %s104
    %p106 = scmp.eq.s32.totalorder %s17, 0
    %p107 = por %p105, %p106
    %s109 = sadd.s32 %s108, 1
    %p112 = scmp.eq.s32.totalorder %s11, 1
    %p113 = scmp.ne.s32.totalorder %s108, %s110
    %p114 = scmp.eq.s32.totalorder %s11, 0
    %p115 = por %p113, %p114
    %p116 = scmp.ne.s32.totalorder %s108, %s110
    %p117 = scmp.eq.s32.totalorder %s16, 1
    %p118 = por %p116, %p117
    %p119 = scmp.ne.s32.totalorder %s110, %s111
    %p120 = scmp.eq.s32.totalorder %s16, 0
    %p121 = por %p119, %p120
    %p122 = scmp.ne.s32.totalorder %s110, %s111
    %p123 = scmp.eq.s32.totalorder %s17, 1
    %p124 = por %p122, %p123
    %p126 = scmp.ne.s32.totalorder %s111, %s125
    %p127 = scmp.eq.s32.totalorder %s17, 0
    %p128 = por %p126, %p127
    %s129 = ssub.s32 %s11, %s18
    %p130 = scmp.eq.s32.totalorder %s129, 0
    %s132 = sadd.s32 %s131, 1
    %s133 = scalar_select %p130, %s131, %s132
    %p136 = pneg %p130
    %p137 = scmp.eq.s32.totalorder %s11, 1
    %p138 = por %p136, %p137
    %p139 = scmp.ne.s32.totalorder %s131, %s134
    %p140 = scmp.eq.s32.totalorder %s11, 0
    %p141 = por %p139, %p140
    %p142 = scmp.ne.s32.totalorder %s131, %s134
    %p143 = scmp.eq.s32.totalorder %s16, 1
    %p144 = por %p142, %p143
    %p145 = scmp.ne.s32.totalorder %s134, %s135
    %p146 = scmp.eq.s32.totalorder %s16, 0
    %p147 = por %p145, %p146
    %p148 = scmp.ne.s32.totalorder %s134, %s135
    %p149 = scmp.eq.s32.totalorder %s17, 1
    %p150 = por %p148, %p149
    %p152 = scmp.ne.s32.totalorder %s135, %s151
    %p153 = scmp.eq.s32.totalorder %s17, 0
    %p154 = por %p152, %p153
    %p155 = scmp.le.s32.totalorder 1, %s11
    %p156 = scmp.lt.s32.totalorder %s11, 3
    %p157 = pnand %p155, %p156
    %p158 = pneg %p157
    // Predicated region
    $region9: #{tpu_custom_call.1} parent=5 // pred_check
      _
    $region10: #{tpu_custom_call.1} parent=5 // pred_check_branch
      %160 = sbr.rel (%p157) target = $region12
    $region11: #{tpu_custom_call.1} parent=5 // pred_region
      %s161 = ssub.s32 %s11, 1
      // Predicated region
      $region13: #{tpu_custom_call.1} parent=11 // pred_check
        %p162 = pneg %p58
      $region14: #{tpu_custom_call.1} parent=11 // pred_check_branch
        %164 = sbr.rel (%p162) target = $region16
      $region15: #{tpu_custom_call.1} parent=11 // pred_region
        _
      $region16: #{tpu_custom_call.1} parent=11 // pred_fallthru
        _
      // Predicated region
      $region17: #{tpu_custom_call.1} parent=11 // pred_check
        %p165 = pneg %p79
      $region18: #{tpu_custom_call.1} parent=11 // pred_check_branch
        %167 = sbr.rel (%p165) target = $region20
      $region19: #{tpu_custom_call.1} parent=11 // pred_region
        _
      $region20: #{tpu_custom_call.1} parent=11 // pred_fallthru
        _
      // Predicated region
      $region21: #{tpu_custom_call.1} parent=11 // pred_check
        %p168 = pneg %p100
      $region22: #{tpu_custom_call.1} parent=11 // pred_check_branch
        %170 = sbr.rel (%p168) target = $region24
      $region23: #{tpu_custom_call.1} parent=11 // pred_region
        _
      $region24: #{tpu_custom_call.1} parent=11 // pred_fallthru
        _
      // Predicated region
      $region25: #{tpu_custom_call.1} parent=11 // pred_check
        %p171 = pneg %p121
      $region26: #{tpu_custom_call.1} parent=11 // pred_check_branch
        %173 = sbr.rel (%p171) target = $region28
      $region27: #{tpu_custom_call.1} parent=11 // pred_region
        _
      $region28: #{tpu_custom_call.1} parent=11 // pred_fallthru
        _
    $region12: #{tpu_custom_call.1} parent=5 // pred_fallthru
      _
    %p174 = scmp.lt.s32.totalorder %s11, 2
    // Predicated region
    $region29: #{tpu_custom_call.1} parent=5 // pred_check
      %p175 = pneg %p174
    $region30: #{tpu_custom_call.1} parent=5 // pred_check_branch
      %177 = sbr.rel (%p175) target = $region32
    $region31: #{tpu_custom_call.1} parent=5 // pred_region
      // Predicated region
      $region33: #{tpu_custom_call.1} parent=31 // pred_check
        %p178 = pneg %p31
      $region34: #{tpu_custom_call.1} parent=31 // pred_check_branch
        %180 = sbr.rel (%p178) target = $region36
      $region35: #{tpu_custom_call.1} parent=31 // pred_region
        %p181 = scmp.lt.s32.totalorder %s11, 1
        %s182 = scalar_select %p181, %s11, 1
        %s183 = smul.addr %s182, 16
        %s184 = smul.addr %s183, 8
        %s185 = scalar_lea.vmem %s0, %s184
      $region36: #{tpu_custom_call.1} parent=31 // pred_fallthru
        _
    $region32: #{tpu_custom_call.1} parent=5 // pred_fallthru
      _
    %p186 = scmp.le.s32.totalorder 1, %s11
    %p187 = scmp.lt.s32.totalorder %s11, 3
    %p188 = pnand %p186, %p187
    %p189 = pneg %p188
    // Predicated region
    $region37: #{tpu_custom_call.1} parent=5 // pred_check
      _
    $region38: #{tpu_custom_call.1} parent=5 // pred_check_branch
      %191 = sbr.rel (%p188) target = $region40
    $region39: #{tpu_custom_call.1} parent=5 // pred_region
      %s192 = ssub.s32 %s11, 1
      %p193 = scmp.lt.s32.totalorder %s16, 1
      %s194 = scalar_select %p193, %s16, 1
      %s195 = smul.addr %s194, 16
      %s196 = smul.addr %s195, 8
      %s197 = scalar_lea.vmem %s0, %s196
      %p198 = pneg %p37
      %p199 = pneg %p34
      %p200 = pneg %p58
      %p201 = pneg %p55
      %p202 = pneg %p79
      %p203 = pneg %p76
      %p204 = pneg %p100
      %p205 = pneg %p97
      %p206 = pneg %p121
      %p207 = pneg %p118
      %p208 = pneg %p147
      %p209 = pneg %p144
      %p210 = scmp.lt.s32.totalorder %s16, 1
      %s211 = scalar_select %p210, %s16, 1
      %s212 = smul.addr %s211, 16
      %s213 = smul.addr %s212, 8
      %s214 = scalar_lea.vmem %s5, %s213
      %p215 = scmp.lt.s32.totalorder %s16, 1
      %s216 = scalar_select %p215, %s16, 1
      %s217 = smul.addr %s216, 16
      %s218 = smul.addr %s217, 8
      %s219 = scalar_lea.vmem %s0, %s218
      %p220 = scmp.lt.s32.totalorder %s16, 1
      %s221 = scalar_select %p220, %s16, 1
      %s222 = smul.addr %s221, 16
      %s223 = smul.addr %s222, 8
      %s224 = scalar_lea.vmem %s5, %s223
      %v225 = vld [vmem:[%s219] sm:$0xff]
      %v226 = vld [vmem:[%s219 + $0x8] sm:$0xff]
      %v227 = vld [vmem:[%s219 + $0x10] sm:$0xff]
      %v228 = vld [vmem:[%s219 + $0x18] sm:$0xff]
      %v229 = vld [vmem:[%s219 + $0x20] sm:$0xff]
      %v230 = vld [vmem:[%s219 + $0x28] sm:$0xff]
      %v231 = vld [vmem:[%s219 + $0x30] sm:$0xff]
      %v232 = vld [vmem:[%s219 + $0x38] sm:$0xff]
      %v233 = vld [vmem:[%s219 + $0x40] sm:$0xff]
      %v234 = vld [vmem:[%s219 + $0x48] sm:$0xff]
      %v235 = vld [vmem:[%s219 + $0x50] sm:$0xff]
      %v236 = vld [vmem:[%s219 + $0x58] sm:$0xff]
      %v237 = vld [vmem:[%s219 + $0x60] sm:$0xff]
      %v238 = vld [vmem:[%s219 + $0x68] sm:$0xff]
      %v239 = vld [vmem:[%s219 + $0x70] sm:$0xff]
      %v240 = vld [vmem:[%s219 + $0x78] sm:$0xff]
      %vm241 = vcmask 785408
      %v242 = vsel %vm241, %v225, 0.0
      %243 = vadd.xlane.f32.xlu0 %v242
      %v244 = vpop.xlane.xlu0 %243
      %v245 = vsel %vm241, %v226, 0.0
      %246 = vadd.xlane.f32.xlu0 %v245
      %v247 = vpop.xlane.xlu0 %246
      %v248 = vsel %vm241, %v227, 0.0
      %249 = vadd.xlane.f32.xlu0 %v248
      %v250 = vpop.xlane.xlu0 %249
      %v251 = vsel %vm241, %v228, 0.0
      %252 = vadd.xlane.f32.xlu0 %v251
      %v253 = vpop.xlane.xlu0 %252
      %v254 = vsel %vm241, %v229, 0.0
      %255 = vadd.xlane.f32.xlu0 %v254
      %v256 = vpop.xlane.xlu0 %255
      %v257 = vsel %vm241, %v230, 0.0
      %258 = vadd.xlane.f32.xlu0 %v257
      %v259 = vpop.xlane.xlu0 %258
      %v260 = vsel %vm241, %v231, 0.0
      %261 = vadd.xlane.f32.xlu0 %v260
      %v262 = vpop.xlane.xlu0 %261
      %v263 = vsel %vm241, %v232, 0.0
      %264 = vadd.xlane.f32.xlu0 %v263
      %v265 = vpop.xlane.xlu0 %264
      %v266 = vsel %vm241, %v233, 0.0
      %267 = vadd.xlane.f32.xlu0 %v266
      %v268 = vpop.xlane.xlu0 %267
      %v269 = vsel %vm241, %v234, 0.0
      %270 = vadd.xlane.f32.xlu0 %v269
      %v271 = vpop.xlane.xlu0 %270
      %v272 = vsel %vm241, %v235, 0.0
      %273 = vadd.xlane.f32.xlu0 %v272
      %v274 = vpop.xlane.xlu0 %273
      %v275 = vsel %vm241, %v236, 0.0
      %276 = vadd.xlane.f32.xlu0 %v275
      %v277 = vpop.xlane.xlu0 %276
      %v278 = vsel %vm241, %v237, 0.0
      %279 = vadd.xlane.f32.xlu0 %v278
      %v280 = vpop.xlane.xlu0 %279
      %v281 = vsel %vm241, %v238, 0.0
      %282 = vadd.xlane.f32.xlu0 %v281
      %v283 = vpop.xlane.xlu0 %282
      %v284 = vsel %vm241, %v239, 0.0
      %285 = vadd.xlane.f32.xlu0 %v284
      %v286 = vpop.xlane.xlu0 %285
      %v287 = vsel %vm241, %v240, 0.0
      %288 = vadd.xlane.f32.xlu0 %v287
      %v289 = vpop.xlane.xlu0 %288
      %v290 = vmul.f32 %v244, 0.010416667
      %v291 = vmul.f32 %v247, 0.010416667
      %v292 = vmul.f32 %v250, 0.010416667
      %v293 = vmul.f32 %v253, 0.010416667
      %v294 = vmul.f32 %v256, 0.010416667
      %v295 = vmul.f32 %v259, 0.010416667
      %v296 = vmul.f32 %v262, 0.010416667
      %v297 = vmul.f32 %v265, 0.010416667
      %v298 = vmul.f32 %v268, 0.010416667
      %v299 = vmul.f32 %v271, 0.010416667
      %v300 = vmul.f32 %v274, 0.010416667
      %v301 = vmul.f32 %v277, 0.010416667
      %v302 = vmul.f32 %v280, 0.010416667
      %v303 = vmul.f32 %v283, 0.010416667
      %v304 = vmul.f32 %v286, 0.010416667
      %v305 = vmul.f32 %v289, 0.010416667
      %v306 = vld [vmem:[%s1] sm:$0xff]
      %v307 = vld [vmem:[%s1 + $0x8] sm:$0xff]
      %v308 = vld [vmem:[%s1 + $0x10] sm:$0xff]
      %v309 = vld [vmem:[%s1 + $0x18] sm:$0xff]
      %v310 = vld [vmem:[%s1 + $0x20] sm:$0xff]
      %v311 = vld [vmem:[%s1 + $0x28] sm:$0xff]
      %v312 = vld [vmem:[%s1 + $0x30] sm:$0xff]
      %v313 = vld [vmem:[%s1 + $0x38] sm:$0xff]
      %v314 = vld [vmem:[%s1 + $0x40] sm:$0xff]
      %v315 = vld [vmem:[%s1 + $0x48] sm:$0xff]
      %v316 = vld [vmem:[%s1 + $0x50] sm:$0xff]
      %v317 = vld [vmem:[%s1 + $0x58] sm:$0xff]
      %v318 = vld [vmem:[%s1 + $0x60] sm:$0xff]
      %v319 = vld [vmem:[%s1 + $0x68] sm:$0xff]
      %v320 = vld [vmem:[%s1 + $0x70] sm:$0xff]
      %v321 = vld [vmem:[%s1 + $0x78] sm:$0xff]
      %v322 = vld [vmem:[%s2] sm:$0x1]
      %v339 = vlaneseq
      %v340 = vand.u32 %v339, 127
      %v341 = vlaneseq
      %v342 = vshrl.u32 %v341, 7
      %v343 = vsub.s32 %v340, %v342
      %v344 = vrot.slane %v290, %v343
      %v345 = vadd.s32 %v340, 4294967288
      %v346 = vlaneseq
      %v347 = vshrl.u32 %v346, 7
      %v348 = vsub.s32 %v345, %v347
      %v349 = vrot.slane %v291, %v348
      %vm350 = vcmask 130112
      %v351 = vsel %vm350, %v349, %v344
      %v352 = vadd.s32 %v340, 4294967280
      %v353 = vlaneseq
      %v354 = vshrl.u32 %v353, 7
      %v355 = vsub.s32 %v352, %v354
      %v356 = vrot.slane %v292, %v355
      %vm357 = vcmask 195712
      %v358 = vsel %vm357, %v356, %v351
      %v359 = vadd.s32 %v340, 4294967272
      %v360 = vlaneseq
      %v361 = vshrl.u32 %v360, 7
      %v362 = vsub.s32 %v359, %v361
      %v363 = vrot.slane %v293, %v362
      %vm364 = vcmask 261312
      %v365 = vsel %vm364, %v363, %v358
      %v366 = vadd.s32 %v340, 4294967264
      %v367 = vlaneseq
      %v368 = vshrl.u32 %v367, 7
      %v369 = vsub.s32 %v366, %v368
      %v370 = vrot.slane %v294, %v369
      %vm371 = vcmask 326912
      %v372 = vsel %vm371, %v370, %v365
      %v373 = vadd.s32 %v340, 4294967256
      %v374 = vlaneseq
      %v375 = vshrl.u32 %v374, 7
      %v376 = vsub.s32 %v373, %v375
      %v377 = vrot.slane %v295, %v376
      %vm378 = vcmask 392512
      %v379 = vsel %vm378, %v377, %v372
      %v380 = vadd.s32 %v340, 4294967248
      %v381 = vlaneseq
      %v382 = vshrl.u32 %v381, 7
      %v383 = vsub.s32 %v380, %v382
      %v384 = vrot.slane %v296, %v383
      %vm385 = vcmask 458112
      %v386 = vsel %vm385, %v384, %v379
      %v387 = vadd.s32 %v340, 4294967240
      %v388 = vlaneseq
      %v389 = vshrl.u32 %v388, 7
      %v390 = vsub.s32 %v387, %v389
      %v391 = vrot.slane %v297, %v390
      %vm392 = vcmask 523712
      %v393 = vsel %vm392, %v391, %v386
      %v394 = vadd.s32 %v340, 4294967232
      %v395 = vlaneseq
      %v396 = vshrl.u32 %v395, 7
      %v397 = vsub.s32 %v394, %v396
      %v398 = vrot.slane %v298, %v397
      %vm399 = vcmask 589312
      %v400 = vsel %vm399, %v398, %v393
      %v401 = vadd.s32 %v340, 4294967224
      %v402 = vlaneseq
      %v403 = vshrl.u32 %v402, 7
      %v404 = vsub.s32 %v401, %v403
      %v405 = vrot.slane %v299, %v404
      %vm406 = vcmask 654912
      %v407 = vsel %vm406, %v405, %v400
      %v408 = vadd.s32 %v340, 4294967216
      %v409 = vlaneseq
      %v410 = vshrl.u32 %v409, 7
      %v411 = vsub.s32 %v408, %v410
      %v412 = vrot.slane %v300, %v411
      %vm413 = vcmask 720512
      %v414 = vsel %vm413, %v412, %v407
      %v415 = vadd.s32 %v340, 4294967208
      %v416 = vlaneseq
      %v417 = vshrl.u32 %v416, 7
      %v418 = vsub.s32 %v415, %v417
      %v419 = vrot.slane %v301, %v418
      %vm420 = vcmask 786112
      %v421 = vsel %vm420, %v419, %v414
      %v422 = vadd.s32 %v340, 4294967200
      %v423 = vlaneseq
      %v424 = vshrl.u32 %v423, 7
      %v425 = vsub.s32 %v422, %v424
      %v426 = vrot.slane %v302, %v425
      %vm427 = vcmask 851712
      %v428 = vsel %vm427, %v426, %v421
      %v429 = vadd.s32 %v340, 4294967192
      %v430 = vlaneseq
      %v431 = vshrl.u32 %v430, 7
      %v432 = vsub.s32 %v429, %v431
      %v433 = vrot.slane %v303, %v432
      %vm434 = vcmask 917312
      %v435 = vsel %vm434, %v433, %v428
      %v436 = vadd.s32 %v340, 4294967184
      %v437 = vlaneseq
      %v438 = vshrl.u32 %v437, 7
      %v439 = vsub.s32 %v436, %v438
      %v440 = vrot.slane %v304, %v439
      %vm441 = vcmask 982912
      %v442 = vsel %vm441, %v440, %v435
      %v443 = vadd.s32 %v340, 4294967176
      %v444 = vlaneseq
      %v445 = vshrl.u32 %v444, 7
      %v446 = vsub.s32 %v443, %v445
      %v447 = vrot.slane %v305, %v446
      %vm448 = vcmask 1048512
      %v449 = vsel %vm448, %v447, %v442
      %451 = vmatprep.subr.mxu0 0.0
      %452 = vmatpush1.msra.mxu0 %v306
      %453 = vmatprep.subr.mxu0 0.0
      %454 = vmatpush1.msra.mxu0 %v307
      %455 = vmatprep.subr.mxu0 0.0
      %456 = vmatpush1.msra.mxu0 %v308
      %457 = vmatprep.subr.mxu0 0.0
      %458 = vmatpush1.msra.mxu0 %v309
      %459 = vmatprep.subr.mxu0 0.0
      %460 = vmatpush1.msra.mxu0 %v310
      %461 = vmatprep.subr.mxu0 0.0
      %462 = vmatpush1.msra.mxu0 %v311
      %463 = vmatprep.subr.mxu0 0.0
      %464 = vmatpush1.msra.mxu0 %v312
      %465 = vmatprep.subr.mxu0 0.0
      %466 = vmatpush1.msra.mxu0 %v313
      %467 = vmatprep.subr.mxu0 0.0
      %468 = vmatpush1.msra.mxu0 %v314
      %469 = vmatprep.subr.mxu0 0.0
      %470 = vmatpush1.msra.mxu0 %v315
      %471 = vmatprep.subr.mxu0 0.0
      %472 = vmatpush1.msra.mxu0 %v316
      %473 = vmatprep.subr.mxu0 0.0
      %474 = vmatpush1.msra.mxu0 %v317
      %475 = vmatprep.subr.mxu0 0.0
      %476 = vmatpush1.msra.mxu0 %v318
      %477 = vmatprep.subr.mxu0 0.0
      %478 = vmatpush1.msra.mxu0 %v319
      %479 = vmatprep.subr.mxu0 0.0
      %480 = vmatpush1.msra.mxu0 %v320
      %481 = vmatprep.subr.mxu0 0.0
      %482 = vmatpush1.msra.mxu0 %v321
      %483 = vmatprep.subr.mxu0 0.0
      %484 = vmatpush1.msra.mxu0 0.0
      %485 = vmatprep.subr.mxu0 0.0
      %486 = vmatpush1.msra.mxu0 0.0
      %487 = vmatprep.subr.mxu0 0.0
      %488 = vmatpush1.msra.mxu0 0.0
      %489 = vmatprep.subr.mxu0 0.0
      %490 = vmatpush1.msra.mxu0 0.0
      %491 = vmatprep.subr.mxu0 0.0
      %492 = vmatpush1.msra.mxu0 0.0
      %493 = vmatprep.subr.mxu0 0.0
      %494 = vmatpush1.msra.mxu0 0.0
      %495 = vmatprep.subr.mxu0 0.0
      %496 = vmatpush1.msra.mxu0 0.0
      %497 = vmatprep.subr.mxu0 0.0
      %498 = vmatpush1.msra.mxu0 0.0
      %499 = vmatprep.subr.mxu0 0.0
      %500 = vmatpush1.msra.mxu0 0.0
      %501 = vmatprep.subr.mxu0 0.0
      %502 = vmatpush1.msra.mxu0 0.0
      %503 = vmatprep.subr.mxu0 0.0
      %504 = vmatpush1.msra.mxu0 0.0
      %505 = vmatprep.subr.mxu0 0.0
      %506 = vmatpush1.msra.mxu0 0.0
      %507 = vmatprep.subr.mxu0 0.0
      %508 = vmatpush1.msra.mxu0 0.0
      %509 = vmatprep.subr.mxu0 0.0
      %510 = vmatpush1.msra.mxu0 0.0
      %511 = vmatprep.subr.mxu0 0.0
      %512 = vmatpush1.msra.mxu0 0.0
      %513 = vmatprep.subr.mxu0 0.0
      %514 = vmatpush1.msra.mxu0 0.0
      %515 = vmatprep.mubr.f32.mxu0 0.0
      %516 = vmatmul.mubr.f32.gmra.mrb[0].mxu0 %v449
      %v517 = vpop.f32.mrb[0].mxu0
      %v518 = vadd.f32 %v322, %v517
      %v519 = vpop.f32.mrb[0].mxu0
      %520 = vdwg.mxu0
      %v521 = vmax.f32 %v518, 0.0
      %v522 = vld [vmem:[%s3] sm:$0xff]
      %v523 = vld [vmem:[%s3 + $0x8] sm:$0xf]
      %v524 = vld [vmem:[%s4] sm:$0x1]
      %vm525 = vcmask 97280
      %v527 = vsel %vm525, %v521, 0
      %vm529 = vcmask 1043456
      %v531 = vsel %vm529, %v523, 0
      %533 = vmatprep.subr.mxu0 0.0
      %534 = vmatpush1.msra.mxu0 %v522
      %535 = vmatprep.subr.mxu0 0.0
      %536 = vmatpush1.msra.mxu0 %v531
      %537 = vmatprep.subr.mxu0 0.0
      %538 = vmatpush1.msra.mxu0 0.0
      %539 = vmatprep.subr.mxu0 0.0
      %540 = vmatpush1.msra.mxu0 0.0
      %541 = vmatprep.subr.mxu0 0.0
      %542 = vmatpush1.msra.mxu0 0.0
      %543 = vmatprep.subr.mxu0 0.0
      %544 = vmatpush1.msra.mxu0 0.0
      %545 = vmatprep.subr.mxu0 0.0
      %546 = vmatpush1.msra.mxu0 0.0
      %547 = vmatprep.subr.mxu0 0.0
      %548 = vmatpush1.msra.mxu0 0.0
      %549 = vmatprep.subr.mxu0 0.0
      %550 = vmatpush1.msra.mxu0 0.0
      %551 = vmatprep.subr.mxu0 0.0
      %552 = vmatpush1.msra.mxu0 0.0
      %553 = vmatprep.subr.mxu0 0.0
      %554 = vmatpush1.msra.mxu0 0.0
      %555 = vmatprep.subr.mxu0 0.0
      %556 = vmatpush1.msra.mxu0 0.0
      %557 = vmatprep.subr.mxu0 0.0
      %558 = vmatpush1.msra.mxu0 0.0
      %559 = vmatprep.subr.mxu0 0.0
      %560 = vmatpush1.msra.mxu0 0.0
      %561 = vmatprep.subr.mxu0 0.0
      %562 = vmatpush1.msra.mxu0 0.0
      %563 = vmatprep.subr.mxu0 0.0
      %564 = vmatpush1.msra.mxu0 0.0
      %565 = vmatprep.subr.mxu0 0.0
      %566 = vmatpush1.msra.mxu0 0.0
      %567 = vmatprep.subr.mxu0 0.0
      %568 = vmatpush1.msra.mxu0 0.0
      %569 = vmatprep.subr.mxu0 0.0
      %570 = vmatpush1.msra.mxu0 0.0
      %571 = vmatprep.subr.mxu0 0.0
      %572 = vmatpush1.msra.mxu0 0.0
      %573 = vmatprep.subr.mxu0 0.0
      %574 = vmatpush1.msra.mxu0 0.0
      %575 = vmatprep.subr.mxu0 0.0
      %576 = vmatpush1.msra.mxu0 0.0
      %577 = vmatprep.subr.mxu0 0.0
      %578 = vmatpush1.msra.mxu0 0.0
      %579 = vmatprep.subr.mxu0 0.0
      %580 = vmatpush1.msra.mxu0 0.0
      %581 = vmatprep.subr.mxu0 0.0
      %582 = vmatpush1.msra.mxu0 0.0
      %583 = vmatprep.subr.mxu0 0.0
      %584 = vmatpush1.msra.mxu0 0.0
      %585 = vmatprep.subr.mxu0 0.0
      %586 = vmatpush1.msra.mxu0 0.0
      %587 = vmatprep.subr.mxu0 0.0
      %588 = vmatpush1.msra.mxu0 0.0
      %589 = vmatprep.subr.mxu0 0.0
      %590 = vmatpush1.msra.mxu0 0.0
      %591 = vmatprep.subr.mxu0 0.0
      %592 = vmatpush1.msra.mxu0 0.0
      %593 = vmatprep.subr.mxu0 0.0
      %594 = vmatpush1.msra.mxu0 0.0
      %595 = vmatprep.subr.mxu0 0.0
      %596 = vmatpush1.msra.mxu0 0.0
      %597 = vmatprep.mubr.f32.mxu0 0.0
      %598 = vmatmul.mubr.f32.gmra.mrb[0].mxu0 %v527
      %v599 = vpop.f32.mrb[0].mxu0
      %v600 = vadd.f32 %v524, %v599
      %v601 = vpop.f32.mrb[0].mxu0
      %602 = vdwg.mxu0
      %v603 = vxor.u32 %v600, 2147483648
      %v604 = vmul.f32 %v603, 1.442695
      %v605 = vpow.pop %v604
      %v606 = vadd.f32 %v605, 1.0
      %v607 = vrcp.pop %v606
      %v608 = vmul.f32 1.0, %v607
      %v609 = vlaneseq
      %v610 = vshrl.u32 %v609, 7
      %v611 = vsub.s32 0, %v610
      %v612 = vrot.slane %v608, %v611
      %614 = vbcast.lane.b32.xlu0 %v612, 256
      %v615 = vpop.permute.xlu0 %614
      %s617 = sor.u32 256, 8
      %618 = vbcast.lane.b32.xlu0 %v612, %s617
      %v619 = vpop.permute.xlu0 %618
      %s621 = sor.u32 256, 16
      %622 = vbcast.lane.b32.xlu0 %v612, %s621
      %v623 = vpop.permute.xlu0 %622
      %s625 = sor.u32 256, 24
      %626 = vbcast.lane.b32.xlu0 %v612, %s625
      %v627 = vpop.permute.xlu0 %626
      %s629 = sor.u32 256, 32
      %630 = vbcast.lane.b32.xlu0 %v612, %s629
      %v631 = vpop.permute.xlu0 %630
      %s633 = sor.u32 256, 40
      %634 = vbcast.lane.b32.xlu0 %v612, %s633
      %v635 = vpop.permute.xlu0 %634
      %s637 = sor.u32 256, 48
      %638 = vbcast.lane.b32.xlu0 %v612, %s637
      %v639 = vpop.permute.xlu0 %638
      %s641 = sor.u32 256, 56
      %642 = vbcast.lane.b32.xlu0 %v612, %s641
      %v643 = vpop.permute.xlu0 %642
      %s645 = sor.u32 256, 64
      %646 = vbcast.lane.b32.xlu0 %v612, %s645
      %v647 = vpop.permute.xlu0 %646
      %s649 = sor.u32 256, 72
      %650 = vbcast.lane.b32.xlu0 %v612, %s649
      %v651 = vpop.permute.xlu0 %650
      %s653 = sor.u32 256, 80
      %654 = vbcast.lane.b32.xlu0 %v612, %s653
      %v655 = vpop.permute.xlu0 %654
      %s657 = sor.u32 256, 88
      %658 = vbcast.lane.b32.xlu0 %v612, %s657
      %v659 = vpop.permute.xlu0 %658
      %s661 = sor.u32 256, 96
      %662 = vbcast.lane.b32.xlu0 %v612, %s661
      %v663 = vpop.permute.xlu0 %662
      %s665 = sor.u32 256, 104
      %666 = vbcast.lane.b32.xlu0 %v612, %s665
      %v667 = vpop.permute.xlu0 %666
      %s669 = sor.u32 256, 112
      %670 = vbcast.lane.b32.xlu0 %v612, %s669
      %v671 = vpop.permute.xlu0 %670
      %s673 = sor.u32 256, 120
      %674 = vbcast.lane.b32.xlu0 %v612, %s673
      %v675 = vpop.permute.xlu0 %674
      %v676 = vmul.f32 %v225, %v615
      %v677 = vmul.f32 %v226, %v619
      %v678 = vmul.f32 %v227, %v623
      %v679 = vmul.f32 %v228, %v627
      %v680 = vmul.f32 %v229, %v631
      %v681 = vmul.f32 %v230, %v635
      %v682 = vmul.f32 %v231, %v639
      %v683 = vmul.f32 %v232, %v643
      %v684 = vmul.f32 %v233, %v647
      %v685 = vmul.f32 %v234, %v651
      %v686 = vmul.f32 %v235, %v655
      %v687 = vmul.f32 %v236, %v659
      %v688 = vmul.f32 %v237, %v663
      %v689 = vmul.f32 %v238, %v667
      %v690 = vmul.f32 %v239, %v671
      %v691 = vmul.f32 %v240, %v675
      %692 = vst.msk [vmem:[%s224] sm:$0xff] %vm241, %v676
      %693 = vst.msk [vmem:[%s224 + $0x8] sm:$0xff] %vm241, %v677
      %694 = vst.msk [vmem:[%s224 + $0x10] sm:$0xff] %vm241, %v678
      %695 = vst.msk [vmem:[%s224 + $0x18] sm:$0xff] %vm241, %v679
      %696 = vst.msk [vmem:[%s224 + $0x20] sm:$0xff] %vm241, %v680
      %697 = vst.msk [vmem:[%s224 + $0x28] sm:$0xff] %vm241, %v681
      %698 = vst.msk [vmem:[%s224 + $0x30] sm:$0xff] %vm241, %v682
      %699 = vst.msk [vmem:[%s224 + $0x38] sm:$0xff] %vm241, %v683
      %700 = vst.msk [vmem:[%s224 + $0x40] sm:$0xff] %vm241, %v684
      %701 = vst.msk [vmem:[%s224 + $0x48] sm:$0xff] %vm241, %v685
      %702 = vst.msk [vmem:[%s224 + $0x50] sm:$0xff] %vm241, %v686
      %703 = vst.msk [vmem:[%s224 + $0x58] sm:$0xff] %vm241, %v687
      %704 = vst.msk [vmem:[%s224 + $0x60] sm:$0xff] %vm241, %v688
      %705 = vst.msk [vmem:[%s224 + $0x68] sm:$0xff] %vm241, %v689
      %706 = vst.msk [vmem:[%s224 + $0x70] sm:$0xff] %vm241, %v690
      %707 = vst.msk [vmem:[%s224 + $0x78] sm:$0xff] %vm241, %v691
      %p708 = scmp.lt.s32.totalorder %s16, 1
      %s709 = scalar_select %p708, %s16, 1
      %s710 = smul.addr %s709, 16
      %s711 = smul.addr %s710, 8
      %s712 = scalar_lea.vmem %s5, %s711
      // Predicated region
      $region41: #{tpu_custom_call.1} parent=39 // pred_check
        %p713 = pneg %p144
      $region42: #{tpu_custom_call.1} parent=39 // pred_check_branch
        %715 = sbr.rel (%p713) target = $region44
      $region43: #{tpu_custom_call.1} parent=39 // pred_region
        _
      $region44: #{tpu_custom_call.1} parent=39 // pred_fallthru
        _
    $region40: #{tpu_custom_call.1} parent=5 // pred_fallthru
      _
    %p716 = scmp.le.s32.totalorder 2, %s11
    // Predicated region
    $region45: #{tpu_custom_call.1} parent=5 // pred_check
      %p717 = pneg %p716
    $region46: #{tpu_custom_call.1} parent=5 // pred_check_branch
      %719 = sbr.rel (%p717) target = $region48
    $region47: #{tpu_custom_call.1} parent=5 // pred_region
      %s720 = ssub.s32 %s11, 2
      // Predicated region
      $region49: #{tpu_custom_call.1} parent=47 // pred_check
        %p721 = pneg %p150
      $region50: #{tpu_custom_call.1} parent=47 // pred_check_branch
        %723 = sbr.rel (%p721) target = $region52
      $region51: #{tpu_custom_call.1} parent=47 // pred_region
        %p724 = scmp.lt.s32.totalorder %s17, 1
        %s725 = scalar_select %p724, %s17, 1
        %s726 = smul.addr %s725, 16
        %s727 = smul.addr %s726, 8
        %s728 = scalar_lea.vmem %s5, %s727
      $region52: #{tpu_custom_call.1} parent=47 // pred_fallthru
        _
    $region48: #{tpu_custom_call.1} parent=5 // pred_fallthru
      _
  $region6: #{tpu_custom_call.1} parent=0 // loop_footer
    %s15 = sadd.s32 1, %s11
  $region7: #{tpu_custom_call.1} parent=0 // loop_footer_branch
    %10 = sbr.rel target = $region3
  $region8: #{tpu_custom_call.1} parent=0 // loop_exit
    _

</llo_original>
